<compile_context>
chip_gen: v5e
topology: v5e:2x2
jax: 0.10.0
libtpu: 0.0.40
codegen_flags: <defaults>
</compile_context>

<pallas_src>
import jax
import jax.numpy as jnp
from jax.experimental import pallas as pl
from jax.experimental.pallas import tpu as pltpu


def _make_kernel(inv_hw):
    inv = float(inv_hw)  # Python literal -> folded at trace time (no captured array)

    def kernel(x_ref, w1t_ref, w2t_ref, o_ref):
        # x_ref block: (Bt, C, HW); w1t_ref: (C, Hc); w2t_ref: (Hc, C)
        # AdaptiveAvgPool2d(1): streaming sum over spatial lanes, / true HW.
        pooled = jnp.sum(x_ref[...].astype(jnp.float32), axis=2) * inv   # (Bt, C)
        # fc[0]: 1x1 conv C -> Hc (no bias), fc[1]: ReLU
        h = jnp.maximum(
            jnp.dot(pooled, w1t_ref[...], preferred_element_type=jnp.float32),
            0.0)                                                          # (Bt, Hc)
        # fc[2]: 1x1 conv Hc -> C (no bias), fc[3]: Sigmoid
        s = jnp.dot(h, w2t_ref[...], preferred_element_type=jnp.float32)  # (Bt, C)
        scale = 1.0 / (1.0 + jnp.exp(-s))                                 # (Bt, C)
        # x * attention: re-stream x_ref, multiply in f32 in-register, one
        # cast, one store (no materialized whole-block f32 temp).
        o_ref[...] = (x_ref[...].astype(jnp.float32)
                      * scale[:, :, None]).astype(o_ref.dtype)

    return kernel


def _pick_batch_tile(B, bytes_per_batch):
    """Largest divisor of B under the VMEM cap; shrink only to reach >= 4
    grid steps (2 per v7x TensorCore) while blocks stay >= ~512 KiB."""
    CAP = 3 << 20        # per-block cap: 2x(in)+2x(out) stays well under the
                         # 32 MiB scoped-VMEM default (v7x: 64 MiB physical)
    FLOOR = 512 << 10    # don't shrink blocks below this just to add steps
    TARGET_STEPS = 4     # >= 2 steps per TensorCore on v7x megacore

    divisors = [d for d in range(1, B + 1) if B % d == 0]
    fitting = [d for d in divisors if d * bytes_per_batch <= CAP] or [1]
    fitting.sort(reverse=True)

    best = fitting[0]
    for d in fitting:
        if d * bytes_per_batch < FLOOR and d != fitting[0]:
            break
        best = d
        if B // d >= TARGET_STEPS:
            break
    return best


def channel_attention(x, w1, w2):
    """SE-style channel attention.

    x:  (B, C, H, W)  float32 or bfloat16
    w1: (Hc, C)  fc[0].weight[:, :, 0, 0]  (1x1 conv, no bias)
    w2: (C, Hc)  fc[2].weight[:, :, 0, 0]  (1x1 conv, no bias)
    Returns an array of the same shape/dtype as x.
    """
    B, C, H, W = x.shape
    HW = H * W
    dsize = jnp.dtype(x.dtype).itemsize

    # Free reshape (contiguous) — no padding, no extra HBM pass.
    x_flat = x.reshape(B, C, HW)

    bytes_per_batch = C * HW * dsize
    Bt = _pick_batch_tile(B, bytes_per_batch)

    # Pre-transposed f32 weights: in-kernel matmuls are (Bt,C)@(C,Hc) and
    # (Bt,Hc)@(Hc,C).
    w1t = w1.T.astype(jnp.float32)   # (C, Hc)
    w2t = w2.T.astype(jnp.float32)   # (Hc, C)

    block_bytes = Bt * C * HW * dsize
    w_bytes = (w1t.size + w2t.size) * 4
    # Double-buffered input + output blocks + pinned weights + headroom,
    # clamped to v7x's 64 MiB physical VMEM.
    vmem_limit = int(min(max(32 << 20, 4 * block_bytes + w_bytes + (2 << 20)),
                         64 << 20))

    kernel = _make_kernel(1.0 / HW)

    out = pl.pallas_call(
        kernel,
        out_shape=jax.ShapeDtypeStruct((B, C, HW), x.dtype),
        grid_spec=pltpu.PrefetchScalarGridSpec(
            num_scalar_prefetch=0,
            grid=(B // Bt,),
            in_specs=[
                # Last two dims are the full (C, HW) extents -> legal for any
                # C/HW; ragged lane tail handled by the DMA (no wrapper pad).
                pl.BlockSpec((Bt, C, HW), lambda b: (b, 0, 0)),
                # Tiny weights reused every step: pin whole arrays in VMEM
                # (no per-step DMA descriptors / semaphore waits).
                pl.BlockSpec(memory_space=pltpu.MemorySpace.VMEM),
                pl.BlockSpec(memory_space=pltpu.MemorySpace.VMEM),
            ],
            out_specs=pl.BlockSpec((Bt, C, HW), lambda b: (b, 0, 0)),
        ),
        compiler_params=pltpu.CompilerParams(
            dimension_semantics=("parallel",),
            vmem_limit_bytes=vmem_limit,
        ),
    )(x_flat, w1t, w2t)

    return out.reshape(B, C, H, W)


def reference(x, w1, w2):
    # Pure-JAX reference of the PyTorch forward (computed in f32).
    xf = x.astype(jnp.float32)
    avg = jnp.mean(xf, axis=(2, 3), keepdims=True)           # (B, C, 1, 1)
    h = jnp.einsum("hc,bcij->bhij", w1, avg)                  # (B, Hc, 1, 1)
    h = jnp.maximum(h, 0.0)
    s = jnp.einsum("ch,bhij->bcij", w2, h)                    # (B, C, 1, 1)
    s = jax.nn.sigmoid(s)
    return xf * s


if __name__ == "__main__":
    # Shapes implied by the module: in_channels=4, reduction=16 -> hidden=8.
    B, C, H, W = 2, 4, 16, 16
    reduction = 16
    Hc = max(C // reduction, 8)   # = 8

    key = jax.random.PRNGKey(0)
    kx, k1, k2 = jax.random.split(key, 3)
    x = jax.random.normal(kx, (B, C, H, W), dtype=jnp.float32)
    # Conv2d 1x1 (no bias) weights as plain matrices.
    w1 = 0.1 * jax.random.normal(k1, (Hc, C), dtype=jnp.float32)
    w2 = 0.1 * jax.random.normal(k2, (C, Hc), dtype=jnp.float32)

    # --- f32, 128-aligned spatial ---
    out = jax.block_until_ready(channel_attention(x, w1, w2))
    ref = reference(x, w1, w2)
    assert out.shape == (B, C, H, W)
    assert jnp.allclose(out, ref, atol=1e-5, rtol=1e-5), "f32 mismatch"

    # --- non-128-multiple HW and odd batch (ragged tail, divisor batch tile) ---
    x2 = jax.random.normal(kx, (3, C, 10, 10), dtype=jnp.float32)
    out2 = jax.block_until_ready(channel_attention(x2, w1, w2))
    ref2 = reference(x2, w1, w2)
    assert out2.shape == (3, C, 10, 10)
    assert jnp.allclose(out2, ref2, atol=1e-5, rtol=1e-5), "ragged mismatch"

    # --- bf16 I/O (compute stays f32 in-register; HBM traffic halved) ---
    xb = x.astype(jnp.bfloat16)
    outb = jax.block_until_ready(channel_attention(xb, w1, w2))
    refb = reference(xb, w1, w2)
    assert outb.dtype == jnp.bfloat16
    assert jnp.allclose(outb.astype(jnp.float32), refb, atol=3e-2, rtol=3e-2), \
        "bf16 mismatch"

    print("KERNEL_OK")
</pallas_src>

<mosaic_0001>
module attributes {stable_mosaic.version = 11 : i64} {
  func.func @kernel(%arg0: i32, %arg1: memref<2x4x256xf32, #tpu.memory_space<vmem>>, %arg2: memref<4x8xf32, #tpu.memory_space<vmem>>, %arg3: memref<8x4xf32, #tpu.memory_space<vmem>>, %arg4: memref<2x4x256xf32, #tpu.memory_space<vmem>>) attributes {dimension_semantics = [#tpu.dimension_semantics<parallel>], iteration_bounds = array<i64: 1>, scalar_prefetch = 0 : i64, scratch_operands = 0 : i64, tpu.core_type = #tpu.core_type<tc>, window_params = [{transform_indices = @transform_0, window_bounds = array<i64: 2, 4, 256>}, {pipeline_mode = #tpu.pipeline_mode<synchronous>, transform_indices = @transform_1, window_bounds = array<i64: 4, 8>}, {pipeline_mode = #tpu.pipeline_mode<synchronous>, transform_indices = @transform_2, window_bounds = array<i64: 8, 4>}, {transform_indices = @transform_3, window_bounds = array<i64: 2, 4, 256>}]} {
    %c0 = arith.constant 0 : index
    %c0_0 = arith.constant 0 : index
    %c0_1 = arith.constant 0 : index
    %0 = vector.load %arg1[%c0, %c0_0, %c0_1] : memref<2x4x256xf32, #tpu.memory_space<vmem>>, vector<2x4x256xf32>
    %cst = arith.constant dense<0.000000e+00> : vector<2x4xf32>
    %1 = vector.multi_reduction <add>, %0, %cst [2] : vector<2x4x256xf32> to vector<2x4xf32>
    %cst_2 = arith.constant 3.906250e-03 : f32
    %2 = vector.broadcast %cst_2 : f32 to vector<2x4xf32>
    %3 = arith.mulf %1, %2 : vector<2x4xf32>
    %c0_3 = arith.constant 0 : index
    %c0_4 = arith.constant 0 : index
    %4 = vector.load %arg2[%c0_3, %c0_4] : memref<4x8xf32, #tpu.memory_space<vmem>>, vector<4x8xf32>
    %cst_5 = arith.constant dense<0.000000e+00> : vector<2x8xf32>
    %5 = tpu.matmul %3, %4, %cst_5 {dimension_numbers = #tpu.dot_dimension_numbers<[1], [0], [0], [1], [0, 0, 1, 1], [], []>} : vector<2x4xf32>, vector<4x8xf32>, vector<2x8xf32> -> vector<2x8xf32>
    %cst_6 = arith.constant 0.000000e+00 : f32
    %6 = vector.broadcast %cst_6 : f32 to vector<2x8xf32>
    %7 = arith.maximumf %5, %6 : vector<2x8xf32>
    %c0_7 = arith.constant 0 : index
    %c0_8 = arith.constant 0 : index
    %8 = vector.load %arg3[%c0_7, %c0_8] : memref<8x4xf32, #tpu.memory_space<vmem>>, vector<8x4xf32>
    %cst_9 = arith.constant dense<0.000000e+00> : vector<2x4xf32>
    %9 = tpu.matmul %7, %8, %cst_9 {dimension_numbers = #tpu.dot_dimension_numbers<[1], [0], [0], [1], [0, 0, 1, 1], [], []>} : vector<2x8xf32>, vector<8x4xf32>, vector<2x4xf32> -> vector<2x4xf32>
    %cst_10 = arith.constant 0.000000e+00 : f32
    %10 = vector.broadcast %cst_10 : f32 to vector<2x4xf32>
    %11 = arith.subf %10, %9 : vector<2x4xf32>
    %12 = math.exp %11 : vector<2x4xf32>
    %cst_11 = arith.constant 1.000000e+00 : f32
    %13 = vector.broadcast %cst_11 : f32 to vector<2x4xf32>
    %14 = arith.addf %13, %12 : vector<2x4xf32>
    %cst_12 = arith.constant 1.000000e+00 : f32
    %15 = vector.broadcast %cst_12 : f32 to vector<2x4xf32>
    %16 = arith.divf %15, %14 : vector<2x4xf32>
    %c0_13 = arith.constant 0 : index
    %c0_14 = arith.constant 0 : index
    %c0_15 = arith.constant 0 : index
    %17 = vector.load %arg1[%c0_13, %c0_14, %c0_15] : memref<2x4x256xf32, #tpu.memory_space<vmem>>, vector<2x4x256xf32>
    %18 = vector.shape_cast %16 : vector<2x4xf32> to vector<2x4x1xf32>
    %19 = vector.broadcast %18 : vector<2x4x1xf32> to vector<2x4x256xf32>
    %20 = arith.mulf %17, %19 : vector<2x4x256xf32>
    %c0_16 = arith.constant 0 : index
    %c0_17 = arith.constant 0 : index
    %c0_18 = arith.constant 0 : index
    %21 = vector.load %arg4[%c0_16, %c0_17, %c0_18] : memref<2x4x256xf32, #tpu.memory_space<vmem>>, vector<2x4x256xf32>
    tpu.vector_store %arg4[%c0_16, %c0_17, %c0_18], %20 {strides = array<i32>} : memref<2x4x256xf32, #tpu.memory_space<vmem>>, vector<2x4x256xf32>,
    return
  }
  func.func @transform_0(%arg0: i32) -> (i32, i32, i32) {
    %c0_i32 = arith.constant 0 : i32
    %c0_i32_0 = arith.constant 0 : i32
    %c0_i32_1 = arith.constant 0 : i32
    return %arg0, %c0_i32, %c0_i32_0 : i32, i32, i32
  }
  func.func @transform_1(%arg0: i32) -> (i32, i32) {
    %c0_i32 = arith.constant 0 : i32
    %c0_i32_0 = arith.constant 0 : i32
    %c0_i32_1 = arith.constant 0 : i32
    return %c0_i32, %c0_i32_0 : i32, i32
  }
  func.func @transform_2(%arg0: i32) -> (i32, i32) {
    %c0_i32 = arith.constant 0 : i32
    %c0_i32_0 = arith.constant 0 : i32
    %c0_i32_1 = arith.constant 0 : i32
    return %c0_i32, %c0_i32_0 : i32, i32
  }
  func.func @transform_3(%arg0: i32) -> (i32, i32, i32) {
    %c0_i32 = arith.constant 0 : i32
    %c0_i32_0 = arith.constant 0 : i32
    %c0_i32_1 = arith.constant 0 : i32
    return %arg0, %c0_i32, %c0_i32_0 : i32, i32, i32
  }
}

</mosaic_0001>

<llo_original>
// kernel: tpu_custom_call.1
$region0: #{tpu_custom_call.1}
  #allocation0 [shape = 'u32[]', space=smem, size = 0x4, offset = 0x4, fixed_abs, tag = 'smem constant byte address 0x4 - core index']
  #allocation1 [shape = 'u32[72,128]{1,0:T(1,128)}', space=vmem, size = 0x9000, scoped, tag = 'internal scratch']
  %s0 = inlined_call_operand.hbm [shape: f32[2,4,256], index: 0, kind: input, shape index: {}]
  %s1 = inlined_call_operand.vmem [shape: f32[4,8], index: 1, kind: input, shape index: {}]
  %s2 = inlined_call_operand.vmem [shape: f32[8,4], index: 2, kind: input, shape index: {}]
  %s3 = inlined_call_operand.hbm [shape: f32[2,4,256], index: 3, kind: output, shape index: {}]
  %s4 = sld [smem:[#allocation0]]
  $region26: #{tpu_custom_call.1} parent=0
    _
  %s6 = ssub.s32 1, %s4
  %s7 = scalar_select 0, %s6, %s4
  $region1: #{tpu_custom_call.1} parent=0
    #allocation2 [shape = 'u8[8192]{0}', space=vmem, size = 0x2000, scoped, tag = 'input window, operand 0, single buffered']
    #allocation3 [shape = 's32[1]{0}', space=sflag, size = 0x4, scoped, tag = 'scoped memory for tpu_custom_call.1']
    #allocation4 [shape = 's32[1]{0}', space=sflag, size = 0x4, scoped, tag = 'scoped memory for tpu_custom_call.1']
    #allocation5 [shape = 'u8[8192]{0}', space=vmem, size = 0x2000, scoped, tag = 'output window, operand 0, single buffered']
    %8 = vsyncpa [#allocation3], 0
    %9 = vsyncpa [#allocation4], 0
    // Predicated region
    $region2: #{tpu_custom_call.1} parent=1 // pred_check
      _
    $region3: #{tpu_custom_call.1} parent=1 // pred_check_branch
      %11 = sbr.rel (0) target = $region5
    $region4: #{tpu_custom_call.1} parent=1 // pred_region
      %13 = vsyncadd [#allocation3], 0
      %s14 = sshll.u32 %s0, 4
      %s15 = int_to_ptr.hbm [resolvable:$true] %s14
      %s16 = sshll.u32 [#allocation2], 4
      %s17 = int_to_ptr.vmem [resolvable:$true] %s16
      %22 = dma.hbm_to_vmem [thread:$0]  %s15, 256, %s17, [#allocation3], 128, 128, 8
    $region5: #{tpu_custom_call.1} parent=1 // pred_fallthru
      _
    // Predicated region
    $region6: #{tpu_custom_call.1} parent=1 // pred_check
      _
    $region7: #{tpu_custom_call.1} parent=1 // pred_check_branch
      %24 = sbr.rel (0) target = $region9
    $region8: #{tpu_custom_call.1} parent=1 // pred_region
      _
    $region9: #{tpu_custom_call.1} parent=1 // pred_fallthru
      _
    // Predicated region
    $region10: #{tpu_custom_call.1} parent=1 // pred_check
      _
    $region11: #{tpu_custom_call.1} parent=1 // pred_check_branch
      %26 = sbr.rel (0) target = $region13
    $region12: #{tpu_custom_call.1} parent=1 // pred_region
      _
    $region13: #{tpu_custom_call.1} parent=1 // pred_fallthru
      _
    // Predicated region
    $region14: #{tpu_custom_call.1} parent=1 // pred_check
      _
    $region15: #{tpu_custom_call.1} parent=1 // pred_check_branch
      %28 = sbr.rel (0) target = $region17
    $region16: #{tpu_custom_call.1} parent=1 // pred_region
      %30 = dma.done [#allocation3], 256
    $region17: #{tpu_custom_call.1} parent=1 // pred_fallthru
      _
    %v31 = vld [vmem:[#allocation2] sm:$0xff]
    %v32 = vld [vmem:[#allocation2 + $0x8] sm:$0xff]
    %35 = vst [vmem:[#allocation1] ss:$2 sm:$0xff] %v31
    %v36 = vld.sshfl [vmem:[#allocation1] sm:$0xff pattern:$0x75316420]
    %v37 = vld.sshfl [vmem:[#allocation1 + $0x8] sm:$0xff pattern:$0x75316420]
    %s38 = scalar_lea.vmem [#allocation1], 16
    %39 = vst [vmem:[%s38] ss:$2 sm:$0xff] %v32
    %v40 = vld.sshfl [vmem:[#allocation1 + $0x10] sm:$0xff pattern:$0x75316420]
    %v41 = vld.sshfl [vmem:[#allocation1 + $0x18] sm:$0xff pattern:$0x75316420]
    %vm46 = vcmask 1043456
    %v47 = vsel %vm46, %v36, 0.0
    %v48 = vsel %vm46, %v37, 0.0
    %v49 = vadd.f32 %v47, %v48
    %50 = vadd.xlane.f32.xlu0 %v49
    %v51 = vpop.xlane.xlu0 %50
    %v52 = vsel %vm46, %v40, 0.0
    %v53 = vsel %vm46, %v41, 0.0
    %v54 = vadd.f32 %v52, %v53
    %55 = vadd.xlane.f32.xlu0 %v54
    %v56 = vpop.xlane.xlu0 %55
    %v57 = vmul.f32 %v51, 0.00390625
    %v58 = vmul.f32 %v56, 0.00390625
    %v59 = vld [vmem:[%s1] sm:$0xf]
    %v62 = vlaneseq
    %v63 = vand.u32 %v62, 127
    %v64 = vperm.slane %v57, %v63
    %v65 = vperm.slane %v58, %v63
    %vm66 = vcmask 1041409
    %v67 = vsel %vm66, %v65, %v64
    %vm68 = vcmask 31744
    %v69 = vsel %vm68, %v67, 0
    %v72 = vsel %vm46, %v59, 0
    %74 = vmatpush.msra.mxu0 0.0
    %75 = vmatpush.msra.mxu0 0.0
    %76 = vmatpush.msra.mxu0 0.0
    %77 = vmatpush.msra.mxu0 0.0
    %78 = vmatpush.msra.mxu0 0.0
    %79 = vmatpush.msra.mxu0 0.0
    %80 = vmatpush.msra.mxu0 0.0
    %81 = vmatpush.msra.mxu0 0.0
    %82 = vmatpush.msra.mxu0 0.0
    %83 = vmatpush.msra.mxu0 0.0
    %84 = vmatpush.msra.mxu0 0.0
    %85 = vmatpush.msra.mxu0 0.0
    %86 = vmatpush.msra.mxu0 0.0
    %87 = vmatpush.msra.mxu0 0.0
    %88 = vmatpush.msra.mxu0 0.0
    %89 = vmatpush.msra.mxu0 %v72
    %90 = vmatmul.f32.gmra.mxu0 %v69
    %v91 = vpop.f32.mrf.mxu0
    %v92 = vadd.f32 0.0, %v91
    %93 = vdwg.mxu0
    %v94 = vmax.f32 %v92, 0.0
    %v95 = vld [vmem:[%s2] sm:$0xff]
    %vm96 = vcmask 64512
    %v98 = vsel %vm96, %v94, 0
    %100 = vmatpush.msra.mxu0 0.0
    %101 = vmatpush.msra.mxu0 0.0
    %102 = vmatpush.msra.mxu0 0.0
    %103 = vmatpush.msra.mxu0 0.0
    %104 = vmatpush.msra.mxu0 0.0
    %105 = vmatpush.msra.mxu0 0.0
    %106 = vmatpush.msra.mxu0 0.0
    %107 = vmatpush.msra.mxu0 0.0
    %108 = vmatpush.msra.mxu0 0.0
    %109 = vmatpush.msra.mxu0 0.0
    %110 = vmatpush.msra.mxu0 0.0
    %111 = vmatpush.msra.mxu0 0.0
    %112 = vmatpush.msra.mxu0 0.0
    %113 = vmatpush.msra.mxu0 0.0
    %114 = vmatpush.msra.mxu0 0.0
    %115 = vmatpush.msra.mxu0 %v95
    %116 = vmatmul.f32.gmra.mxu0 %v98
    %v117 = vpop.f32.mrf.mxu0
    %v118 = vadd.f32 0.0, %v117
    %119 = vdwg.mxu0
    %v120 = vsub.f32 0.0, %v118
    %v121 = vmul.f32 %v120, 1.442695
    %v122 = vpow.pop %v121
    %v123 = vadd.f32 %v122, 1.0
    %v124 = vrcp.pop %v123
    %v125 = vmul.f32 %v123, %v124
    %v126 = vsub.f32 1.0, %v125
    %v127 = vmul.f32 %v124, %v126
    %v128 = vadd.f32 %v124, %v127
    %vm129 = vweird.f32 %v123
    %vm130 = vweird.f32 %v124
    %vm131 = vmor %vm129, %vm130
    %v132 = vsel %vm131, %v124, %v128
    %v133 = vand.u32 2147483647, %v123
    %vm134 = vcmp.eq.f32.partialorder %v133, 8.507059e+37
    %v135 = vand.u32 %v123, 2147483648
    %v136 = vor.u32 1.1754944e-38, %v135
    %v137 = vsel %vm134, %v136, %v132
    %v138 = vmul.f32 1.0, %v137
    %v139 = vperm.slane %v138, 0
    %v140 = vlaneseq
    %v141 = vshrl.u32 %v140, 7
    %143 = vset.pattern.permute.xlu0 %v141
    %144 = vperm.xlu0 %143, %v139
    %v145 = vpop.permute.xlu0 %144
    %v146 = vperm.slane %v138, 1
    %v147 = vlaneseq
    %v148 = vshrl.u32 %v147, 7
    %150 = vset.pattern.permute.xlu0 %v148
    %151 = vperm.xlu0 %150, %v146
    %v152 = vpop.permute.xlu0 %151
    %v156 = vunpack.c.l.s4 839922192
    %v157 = vunpack.c.0.s8 %v156
    %v158 = vperm.slane %v145, %v157
    %v160 = vunpack.c.l.s4 839922192
    %v161 = vunpack.c.0.s8 %v160
    %v162 = vperm.slane %v152, %v161
    %v165 = vmul.f32 %v31, %v158
    %v166 = vmul.f32 %v32, %v162
    %167 = vst [vmem:[#allocation5] sm:$0xff] %v165
    %168 = vst [vmem:[#allocation5 + $0x8] sm:$0xff] %v166
    // Predicated region
    $region18: #{tpu_custom_call.1} parent=1 // pred_check
      _
    $region19: #{tpu_custom_call.1} parent=1 // pred_check_branch
      %170 = sbr.rel (0) target = $region21
    $region20: #{tpu_custom_call.1} parent=1 // pred_region
      %172 = vsyncadd [#allocation4], 0
      %s173 = sshll.u32 [#allocation5], 4
      %s174 = int_to_ptr.vmem [resolvable:$true] %s173
      %s175 = sshll.u32 %s3, 4
      %s176 = int_to_ptr.hbm [resolvable:$true] %s175
      %181 = dma.vmem_to_hbm [thread:$0]  %s174, 256, %s176, [#allocation4], 128, 128, 8
    $region21: #{tpu_custom_call.1} parent=1 // pred_fallthru
      _
    // Predicated region
    $region22: #{tpu_custom_call.1} parent=1 // pred_check
      _
    $region23: #{tpu_custom_call.1} parent=1 // pred_check_branch
      %183 = sbr.rel (0) target = $region25
    $region24: #{tpu_custom_call.1} parent=1 // pred_region
      %185 = dma.done [#allocation4], 256
    $region25: #{tpu_custom_call.1} parent=1 // pred_fallthru
      _
    %186 = vsyncpa [#allocation3], 1
    %187 = vsyncpa [#allocation4], 1

</llo_original>
